<compile_context>
chip_gen: v7x
topology: tpu7x:2x2x1
jax: 0.10.0
libtpu: 0.0.40
codegen_flags: <defaults>
</compile_context>

<pallas_src>
import functools

import jax
import jax.numpy as jnp
from jax import lax
from jax.experimental import pallas as pl
from jax.experimental.pallas import tpu as pltpu

HANDLE_TYPE = 3             # NodeType.HANDLE
NORMALIZE_EPS = 1e-12       # F.normalize clamp
ROWS = 10                   # packed component rows (q xyz, e1 xyz, e2 xyz, weight)
LANES = 128                 # lanes per vreg
SUB = 8                     # sublanes per vreg
TILE_S_MAX = 512            # max sublane rows per grid step -> 65536 corr., ~2.6 MiB block


def _cdiv(a, b):
    return -(-a // b)


def _round_up(a, b):
    return _cdiv(a, b) * b


def _num_splits():
    """2 grid splits only on dual-TensorCore (v7x-class) chips, else 1."""
    try:
        kind = jax.devices()[0].device_kind.lower()
    except Exception:
        return 1
    return 2 if ("v7" in kind or "7x" in kind) else 1


# ----------------------------------------------------------------------------
# Pallas kernel: per-correspondence pred-pos signed distance + cubic penalty,
# accumulated into a lane-dense (8,128) resident partial-sum block per split.
# ----------------------------------------------------------------------------
def _repulsion_kernel(x_ref, o_ref, *, penalty_eps, tile_s):
    # x_ref : (10, tile_s, 128) f32 block, o_ref : (8, 128) f32 resident partials
    @pl.when(pl.program_id(1) == 0)
    def _():
        o_ref[...] = jnp.zeros_like(o_ref)

    peps = jnp.float32(penalty_eps)
    eps2 = jnp.float32(NORMALIZE_EPS * NORMALIZE_EPS)
    n_sub = tile_s // SUB

    def body(s, acc):
        off = pl.multiple_of(s * SUB, SUB)

        def comp(i):
            return x_ref[i, pl.ds(off, SUB), :]            # (8, 128) f32

        qx, qy, qz = comp(0), comp(1), comp(2)
        e1x, e1y, e1z = comp(3), comp(4), comp(5)
        e2x, e2y, e2z = comp(6), comp(7), comp(8)
        w = comp(9)

        # face normal = cross(e1, e2); 1/|n| via rsqrt (EUP slot)
        nx = e1y * e2z - e1z * e2y
        ny = e1z * e2x - e1x * e2z
        nz = e1x * e2y - e1y * e2x
        inv_norm = lax.rsqrt(jnp.maximum(nx * nx + ny * ny + nz * nz, eps2))
        d_curr = (qx * nx + qy * ny + qz * nz) * inv_norm
        interp = jnp.maximum(peps - d_curr, 0.0)
        return acc + interp * interp * interp * w

    acc = lax.fori_loop(0, n_sub, body,
                        jnp.zeros((SUB, LANES), jnp.float32),
                        unroll=min(4, n_sub))
    o_ref[...] += acc


def repulsion_loss_pallas(rows, *, penalty_eps):
    """rows : (10, E_total) f32 component-major packed correspondences."""
    assert rows.shape[0] == ROWS
    e_total = rows.shape[1]

    num_splits = _num_splits()
    lane_rows = max(_cdiv(e_total, LANES), 1)            # (·,128) rows needed
    rows_per_split = _cdiv(lane_rows, num_splits)
    tile_s = min(TILE_S_MAX, _round_up(max(rows_per_split, SUB), SUB))
    tiles_per_split = _cdiv(rows_per_split, tile_s)
    s_total = num_splits * tiles_per_split * tile_s
    e_pad = s_total * LANES

    # padding lanes are all-zero -> weight row 0 -> contribute nothing
    rows = jnp.pad(rows, ((0, 0), (0, e_pad - e_total)))
    packed = rows.reshape(ROWS, s_total, LANES)

    kernel = functools.partial(_repulsion_kernel,
                               penalty_eps=float(penalty_eps),
                               tile_s=tile_s)
    partials = pl.pallas_call(
        kernel,
        out_shape=jax.ShapeDtypeStruct((SUB, num_splits * LANES), jnp.float32),
        grid=(num_splits, tiles_per_split),
        in_specs=[pl.BlockSpec(
            (ROWS, tile_s, LANES),
            lambda c, i: (0, c * tiles_per_split + i, 0))],
        out_specs=pl.BlockSpec((SUB, LANES), lambda c, i: (0, c)),
        compiler_params=pltpu.CompilerParams(
            dimension_semantics=("parallel", "arbitrary"),
            vmem_limit_bytes=32 * 1024 * 1024),
    )(packed)
    # tiny (8, num_splits*128) lane-dense partials -> scalar, outside the kernel
    return jnp.sum(partials)


# ----------------------------------------------------------------------------
# Glue: gathers, prev-pos sign/stashed precompute, component-major packing
# (plain JAX — the gathers have no rectangular-tile Pallas equivalent).
# ----------------------------------------------------------------------------
def _pack_one(ex, *, correspondence_eps, pinned_relative_weight, sign):
    prev_pos = ex["prev_pos"].astype(jnp.float32)
    pred_pos = ex["pred_pos"].astype(jnp.float32)
    faces = ex["faces"]
    vertex_type = ex["vertex_type"]
    nodes_from = ex["nodes_from"]
    faces_to = ex["faces_to"]

    pinned = vertex_type[:, 0] == HANDLE_TYPE                      # (N,)
    tri_pinned = pinned[faces].any(axis=1)                          # (F,)
    full_pinned = jnp.logical_or(pinned[nodes_from], tri_pinned[faces_to])

    gathered_faces = faces[faces_to]                                # (E, 3)

    def signed_dist(pos):
        tri = pos[gathered_faces]                                   # (E, 3, 3)
        v0, v1, v2 = tri[:, 0], tri[:, 1], tri[:, 2]
        n = jnp.cross(v1 - v0, v2 - v0)
        n = n / jnp.maximum(jnp.linalg.norm(n, axis=-1, keepdims=True),
                            NORMALIZE_EPS)
        c = tri.mean(axis=1)
        p = pos[nodes_from]
        return ((p - c) * n).sum(-1)

    # prev-position path: only its sign and the stashed mask are needed downstream
    d_prev = signed_dist(prev_pos)
    stashed = (jnp.abs(d_prev) < correspondence_eps).astype(jnp.float32)
    s = jnp.sign(d_prev) * jnp.float32(sign)                        # folds into q

    tri_pred = pred_pos[gathered_faces]
    v0, v1, v2 = tri_pred[:, 0], tri_pred[:, 1], tri_pred[:, 2]
    q = (pred_pos[nodes_from] - tri_pred.mean(axis=1)) * s[:, None]
    e1 = v1 - v0
    e2 = v2 - v0
    # pinned weight commutes through the cube as weight**3; stashed is a 0/1 mask
    w = stashed * jnp.where(full_pinned,
                            jnp.float32(pinned_relative_weight) ** 3,
                            jnp.float32(1.0))

    return jnp.concatenate([
        q.T,          # rows 0-2
        e1.T,         # rows 3-5
        e2.T,         # rows 6-8
        w[None, :],   # row  9
    ], axis=0).astype(jnp.float32)                                  # (10, E)


def pack_examples(examples, *, correspondence_eps, pinned_relative_weight, sign=1):
    parts = []
    for ex in examples:
        if ex["step"] == 0 or ex["nodes_from"].shape[0] == 0:
            continue
        parts.append(_pack_one(ex,
                               correspondence_eps=correspondence_eps,
                               pinned_relative_weight=pinned_relative_weight,
                               sign=sign))
    if not parts:
        return None
    return jnp.concatenate(parts, axis=1)                           # (10, E_total)


# ----------------------------------------------------------------------------
# Pure-JAX reference (mirrors the PyTorch calc_loss semantics)
# ----------------------------------------------------------------------------
def ref_calc_loss(prev_pos, pred_pos, faces, vertex_type, nodes_from, faces_to,
                  *, correspondence_eps, penalty_eps, pinned_relative_weight,
                  sign=1):
    pinned = vertex_type[:, 0] == HANDLE_TYPE
    tri_pinned = pinned[faces].any(axis=1)

    def sd(pos):
        tri = pos[faces[faces_to]]
        v0, v1, v2 = tri[:, 0], tri[:, 1], tri[:, 2]
        n = jnp.cross(v1 - v0, v2 - v0)
        n = n / jnp.maximum(jnp.linalg.norm(n, axis=-1, keepdims=True),
                            NORMALIZE_EPS)
        c = tri.mean(axis=1)
        p = pos[nodes_from]
        return ((p - c) * n).sum(-1)

    d_prev = sd(prev_pos)
    stashed = jnp.abs(d_prev) < correspondence_eps
    d_curr = sd(pred_pos) * jnp.sign(d_prev) * sign
    interp = jnp.maximum(penalty_eps - d_curr, 0.0)
    full_pinned = jnp.logical_or(pinned[nodes_from], tri_pinned[faces_to])
    interp = jnp.where(full_pinned, interp * pinned_relative_weight, interp)
    return jnp.sum(jnp.where(stashed, interp ** 3, 0.0))


# ----------------------------------------------------------------------------
# Criterion.forward equivalent
# ----------------------------------------------------------------------------
def get_weight(iter_num, mcfg):
    n_rampup = mcfg["step_max"] - mcfg["step_start"]
    it = max(iter_num - mcfg["step_start"], 0)
    progress = min(it / n_rampup, 1.0)
    return mcfg["weight_start"] + (mcfg["weight_max"] - mcfg["weight_start"]) * progress


def criterion_forward(examples, iter_num, mcfg):
    weight = get_weight(iter_num, mcfg)
    b = len(examples)
    if weight == 0:
        return jnp.float32(0.0), weight
    rows = pack_examples(examples,
                         correspondence_eps=mcfg["correspondence_eps"],
                         pinned_relative_weight=mcfg["pinned_relative_weight"],
                         sign=1)
    if rows is None:
        return jnp.float32(0.0), weight
    # Per-example losses are plain sums over correspondences, so one fused launch
    # over the concatenated batch gives sum_i(loss_i) directly.
    total = repulsion_loss_pallas(rows, penalty_eps=mcfg["penalty_eps"])
    loss = total / b * weight
    return loss, weight


# ----------------------------------------------------------------------------
if __name__ == "__main__":
    key = jax.random.PRNGKey(0)
    B, N, F, E = 2, 64, 32, 48        # small synthetic shapes
    mcfg = dict(pinned_relative_weight=2.0, correspondence_eps=0.5,
                penalty_eps=0.3, weight_start=0.0, weight_max=1.0,
                step_start=0, step_max=100)
    iter_num = 50

    examples = []
    for b in range(B):
        key, k1, k2, k3, k4, k5, k6 = jax.random.split(key, 7)
        prev_pos = jax.random.uniform(k1, (N, 3), jnp.float32, -1.0, 1.0)
        pred_pos = prev_pos + 0.05 * jax.random.normal(k2, (N, 3), jnp.float32)
        faces = jax.random.randint(k3, (F, 3), 0, N, jnp.int32)
        vertex_type = (jax.random.bernoulli(k4, 0.2, (N, 1)) *
                       HANDLE_TYPE).astype(jnp.int32)
        nodes_from = jax.random.randint(k5, (E,), 0, N, jnp.int32)
        faces_to = jax.random.randint(k6, (E,), 0, F, jnp.int32)
        examples.append(dict(prev_pos=prev_pos, pred_pos=pred_pos, faces=faces,
                             vertex_type=vertex_type, nodes_from=nodes_from,
                             faces_to=faces_to, step=1))

    loss, weight = criterion_forward(examples, iter_num, mcfg)
    loss = jax.block_until_ready(loss)

    # reference check (pure JAX)
    ref_losses = [ref_calc_loss(
        ex["prev_pos"], ex["pred_pos"], ex["faces"], ex["vertex_type"],
        ex["nodes_from"], ex["faces_to"],
        correspondence_eps=mcfg["correspondence_eps"],
        penalty_eps=mcfg["penalty_eps"],
        pinned_relative_weight=mcfg["pinned_relative_weight"])
        for ex in examples]
    ref_loss = sum(ref_losses) / B * weight
    assert jnp.allclose(loss, ref_loss, rtol=1e-4, atol=1e-6), (loss, ref_loss)

    print("KERNEL_OK")
</pallas_src>

<mosaic_0001>
module attributes {stable_mosaic.version = 11 : i64} {
  func.func @_repulsion_kernel(%arg0: i32, %arg1: i32, %arg2: memref<10x8x128xf32, #tpu.memory_space<vmem>>, %arg3: memref<8x128xf32, #tpu.memory_space<vmem>>) attributes {dimension_semantics = [#tpu.dimension_semantics<parallel>, #tpu.dimension_semantics<arbitrary>], iteration_bounds = array<i64: 1, 1>, scalar_prefetch = 0 : i64, scratch_operands = 0 : i64, tpu.core_type = #tpu.core_type<tc>, window_params = [{transform_indices = @transform_0, window_bounds = array<i64: 10, 8, 128>}, {transform_indices = @transform_1, window_bounds = array<i64: 8, 128>}]} {
    %c0_i32 = arith.constant 0 : i32
    %0 = arith.cmpi eq, %arg1, %c0_i32 : i32
    %1 = arith.extui %0 : i1 to i32
    %c0_i32_0 = arith.constant 0 : i32
    %2 = arith.cmpi ne, %1, %c0_i32_0 : i32
    scf.if %2 {
      %cst_19 = arith.constant 0.000000e+00 : f32
      %70 = vector.broadcast %cst_19 : f32 to vector<8x128xf32>
      %c0_20 = arith.constant 0 : index
      %c0_21 = arith.constant 0 : index
      %71 = vector.load %arg3[%c0_20, %c0_21] : memref<8x128xf32, #tpu.memory_space<vmem>>, vector<8x128xf32>
      tpu.vector_store %arg3[%c0_20, %c0_21], %70 {strides = array<i32>} : memref<8x128xf32, #tpu.memory_space<vmem>>, vector<8x128xf32>,
    } else {
    }
    %cst = arith.constant 0.000000e+00 : f32
    %3 = vector.broadcast %cst : f32 to vector<8x128xf32>
    %cst_1 = arith.constant 1.000000e-24 : f32
    %cst_2 = arith.constant 3.000000e-01 : f32
    %c0_i32_3 = arith.constant 0 : i32
    %c8_i32 = arith.constant 8 : i32
    %4 = arith.muli %c0_i32_3, %c8_i32 : i32
    %5 = tpu.assume_multiple %4, 8 : i32
    %c0 = arith.constant 0 : index
    %6 = arith.index_cast %5 : i32 to index
    %c0_4 = arith.constant 0 : index
    %7 = vector.load %arg2[%c0, %6, %c0_4] : memref<10x8x128xf32, #tpu.memory_space<vmem>>, vector<1x8x128xf32>
    %8 = vector.shape_cast %7 : vector<1x8x128xf32> to vector<8x128xf32>
    %c1 = arith.constant 1 : index
    %9 = arith.index_cast %5 : i32 to index
    %c0_5 = arith.constant 0 : index
    %10 = vector.load %arg2[%c1, %9, %c0_5] : memref<10x8x128xf32, #tpu.memory_space<vmem>>, vector<1x8x128xf32>
    %11 = vector.shape_cast %10 : vector<1x8x128xf32> to vector<8x128xf32>
    %c2 = arith.constant 2 : index
    %12 = arith.index_cast %5 : i32 to index
    %c0_6 = arith.constant 0 : index
    %13 = vector.load %arg2[%c2, %12, %c0_6] : memref<10x8x128xf32, #tpu.memory_space<vmem>>, vector<1x8x128xf32>
    %14 = vector.shape_cast %13 : vector<1x8x128xf32> to vector<8x128xf32>
    %c3 = arith.constant 3 : index
    %15 = arith.index_cast %5 : i32 to index
    %c0_7 = arith.constant 0 : index
    %16 = vector.load %arg2[%c3, %15, %c0_7] : memref<10x8x128xf32, #tpu.memory_space<vmem>>, vector<1x8x128xf32>
    %17 = vector.shape_cast %16 : vector<1x8x128xf32> to vector<8x128xf32>
    %c4 = arith.constant 4 : index
    %18 = arith.index_cast %5 : i32 to index
    %c0_8 = arith.constant 0 : index
    %19 = vector.load %arg2[%c4, %18, %c0_8] : memref<10x8x128xf32, #tpu.memory_space<vmem>>, vector<1x8x128xf32>
    %20 = vector.shape_cast %19 : vector<1x8x128xf32> to vector<8x128xf32>
    %c5 = arith.constant 5 : index
    %21 = arith.index_cast %5 : i32 to index
    %c0_9 = arith.constant 0 : index
    %22 = vector.load %arg2[%c5, %21, %c0_9] : memref<10x8x128xf32, #tpu.memory_space<vmem>>, vector<1x8x128xf32>
    %23 = vector.shape_cast %22 : vector<1x8x128xf32> to vector<8x128xf32>
    %c6 = arith.constant 6 : index
    %24 = arith.index_cast %5 : i32 to index
    %c0_10 = arith.constant 0 : index
    %25 = vector.load %arg2[%c6, %24, %c0_10] : memref<10x8x128xf32, #tpu.memory_space<vmem>>, vector<1x8x128xf32>
    %26 = vector.shape_cast %25 : vector<1x8x128xf32> to vector<8x128xf32>
    %c7 = arith.constant 7 : index
    %27 = arith.index_cast %5 : i32 to index
    %c0_11 = arith.constant 0 : index
    %28 = vector.load %arg2[%c7, %27, %c0_11] : memref<10x8x128xf32, #tpu.memory_space<vmem>>, vector<1x8x128xf32>
    %29 = vector.shape_cast %28 : vector<1x8x128xf32> to vector<8x128xf32>
    %c8 = arith.constant 8 : index
    %30 = arith.index_cast %5 : i32 to index
    %c0_12 = arith.constant 0 : index
    %31 = vector.load %arg2[%c8, %30, %c0_12] : memref<10x8x128xf32, #tpu.memory_space<vmem>>, vector<1x8x128xf32>
    %32 = vector.shape_cast %31 : vector<1x8x128xf32> to vector<8x128xf32>
    %c9 = arith.constant 9 : index
    %33 = arith.index_cast %5 : i32 to index
    %c0_13 = arith.constant 0 : index
    %34 = vector.load %arg2[%c9, %33, %c0_13] : memref<10x8x128xf32, #tpu.memory_space<vmem>>, vector<1x8x128xf32>
    %35 = vector.shape_cast %34 : vector<1x8x128xf32> to vector<8x128xf32>
    %36 = arith.mulf %20, %32 : vector<8x128xf32>
    %37 = arith.mulf %23, %29 : vector<8x128xf32>
    %38 = arith.subf %36, %37 : vector<8x128xf32>
    %39 = arith.mulf %23, %26 : vector<8x128xf32>
    %40 = arith.mulf %17, %32 : vector<8x128xf32>
    %41 = arith.subf %39, %40 : vector<8x128xf32>
    %42 = arith.mulf %17, %29 : vector<8x128xf32>
    %43 = arith.mulf %20, %26 : vector<8x128xf32>
    %44 = arith.subf %42, %43 : vector<8x128xf32>
    %45 = arith.mulf %38, %38 : vector<8x128xf32>
    %46 = arith.mulf %41, %41 : vector<8x128xf32>
    %47 = arith.addf %45, %46 : vector<8x128xf32>
    %48 = arith.mulf %44, %44 : vector<8x128xf32>
    %49 = arith.addf %47, %48 : vector<8x128xf32>
    %50 = vector.broadcast %cst_1 : f32 to vector<8x128xf32>
    %51 = arith.maximumf %49, %50 : vector<8x128xf32>
    %52 = math.rsqrt %51 : vector<8x128xf32>
    %53 = arith.mulf %8, %38 : vector<8x128xf32>
    %54 = arith.mulf %11, %41 : vector<8x128xf32>
    %55 = arith.addf %53, %54 : vector<8x128xf32>
    %56 = arith.mulf %14, %44 : vector<8x128xf32>
    %57 = arith.addf %55, %56 : vector<8x128xf32>
    %58 = arith.mulf %57, %52 : vector<8x128xf32>
    %59 = vector.broadcast %cst_2 : f32 to vector<8x128xf32>
    %60 = arith.subf %59, %58 : vector<8x128xf32>
    %cst_14 = arith.constant 0.000000e+00 : f32
    %61 = vector.broadcast %cst_14 : f32 to vector<8x128xf32>
    %62 = arith.maximumf %60, %61 : vector<8x128xf32>
    %63 = arith.mulf %62, %62 : vector<8x128xf32>
    %64 = arith.mulf %63, %62 : vector<8x128xf32>
    %65 = arith.mulf %64, %35 : vector<8x128xf32>
    %66 = arith.addf %3, %65 : vector<8x128xf32>
    %c1_i32 = arith.constant 1 : i32
    %c0_15 = arith.constant 0 : index
    %c0_16 = arith.constant 0 : index
    %67 = vector.load %arg3[%c0_15, %c0_16] : memref<8x128xf32, #tpu.memory_space<vmem>>, vector<8x128xf32>
    %68 = arith.addf %67, %66 : vector<8x128xf32>
    %c0_17 = arith.constant 0 : index
    %c0_18 = arith.constant 0 : index
    %69 = vector.load %arg3[%c0_17, %c0_18] : memref<8x128xf32, #tpu.memory_space<vmem>>, vector<8x128xf32>
    tpu.vector_store %arg3[%c0_17, %c0_18], %68 {strides = array<i32>} : memref<8x128xf32, #tpu.memory_space<vmem>>, vector<8x128xf32>,
    return
  }
  func.func @transform_0(%arg0: i32, %arg1: i32) -> (i32, i32, i32) {
    %c1_i32 = arith.constant 1 : i32
    %0 = arith.muli %arg0, %c1_i32 : i32
    %1 = arith.addi %0, %arg1 : i32
    %c0_i32 = arith.constant 0 : i32
    %c0_i32_0 = arith.constant 0 : i32
    %c0_i32_1 = arith.constant 0 : i32
    return %c0_i32, %1, %c0_i32_0 : i32, i32, i32
  }
  func.func @transform_1(%arg0: i32, %arg1: i32) -> (i32, i32) {
    %c0_i32 = arith.constant 0 : i32
    %c0_i32_0 = arith.constant 0 : i32
    return %c0_i32, %arg0 : i32, i32
  }
}

</mosaic_0001>

<llo_original>
// kernel: tpu_custom_call.1
$region0: #{tpu_custom_call.1}
  #allocation0 [shape = 'u32[]', space=smem, size = 0x4, offset = 0x4, fixed_abs, tag = 'smem constant byte address 0x4 - core index']
  #allocation1 [shape = 'u32[144,128]{1,0:T(1,128)}', space=vmem, size = 0x12000, scoped, tag = 'internal scratch']
  %s0 = inlined_call_operand.hbm [shape: f32[10,8,128], index: 0, kind: input, shape index: {}]
  %s1 = inlined_call_operand.hbm [shape: f32[8,128], index: 1, kind: output, shape index: {}]
  %s2 = sld [smem:[#allocation0]]
  $region22: #{tpu_custom_call.1} parent=0
    _
  %s4 = ssub.s32 1, %s2
  %s5 = scalar_select 0, %s4, %s2
  $region1: #{tpu_custom_call.1} parent=0
    #allocation2 [shape = 'u8[40960]{0}', space=vmem, size = 0xa000, scoped, tag = 'input window, operand 0, single buffered']
    #allocation3 [shape = 's32[1]{0}', space=sflag, size = 0x4, scoped, tag = 'scoped memory for tpu_custom_call.1']
    #allocation4 [shape = 's32[1]{0}', space=sflag, size = 0x4, scoped, tag = 'scoped memory for tpu_custom_call.1']
    #allocation5 [shape = 'u8[4096]{0}', space=vmem, size = 0x1000, scoped, tag = 'output window, operand 0, single buffered']
    %6 = vsyncpa [#allocation3], 0
    %7 = vsyncpa [#allocation4], 0
    // Predicated region
    $region2: #{tpu_custom_call.1} parent=1 // pred_check
      _
    $region3: #{tpu_custom_call.1} parent=1 // pred_check_branch
      %9 = sbr.rel (0) target = $region5
    $region4: #{tpu_custom_call.1} parent=1 // pred_region
      %s10 = sadd.s32 0, 0
      %s12 = ssub.s32 1280, 1280
      %13 = vsyncadd [#allocation3], %s12
      %s14 = smul.addr %s10, 128
      %s15 = scalar_lea.hbm %s0, %s14
      %s16 = sshll.u32 [#allocation2], 4
      %s17 = int_to_ptr.vmem [resolvable:$true] %s16
      %22 = dma.hbm_to_vmem [thread:$0]  %s15, 1280, %s17, [#allocation3], 128, 128, 8
    $region5: #{tpu_custom_call.1} parent=1 // pred_fallthru
      _
    // Predicated region
    $region6: #{tpu_custom_call.1} parent=1 // pred_check
      _
    $region7: #{tpu_custom_call.1} parent=1 // pred_check_branch
      %24 = sbr.rel (0) target = $region9
    $region8: #{tpu_custom_call.1} parent=1 // pred_region
      %25 = dma.done [#allocation3], 1280
    $region9: #{tpu_custom_call.1} parent=1 // pred_fallthru
      _
    %s26 = sadd.s32 0, 0
    %p27 = scmp.eq.s32.totalorder 0, 0
    // Predicated region
    $region10: #{tpu_custom_call.1} parent=1 // pred_check
      %p28 = pneg %p27
    $region11: #{tpu_custom_call.1} parent=1 // pred_check_branch
      %30 = sbr.rel (%p28) target = $region13
    $region12: #{tpu_custom_call.1} parent=1 // pred_region
      %31 = vst [vmem:[#allocation5] sm:$0xff] 0.0
    $region13: #{tpu_custom_call.1} parent=1 // pred_fallthru
      _
    %v32 = vld [vmem:[#allocation2] sm:$0xff]
    %s33 = sadd.s32 0, 8
    %s34 = scalar_lea.vmem [#allocation2], %s33
    %v35 = vld [vmem:[%s34] sm:$0xff]
    %s36 = sadd.s32 0, 16
    %s37 = scalar_lea.vmem [#allocation2], %s36
    %v38 = vld [vmem:[%s37] sm:$0xff]
    %s39 = sadd.s32 0, 24
    %s40 = scalar_lea.vmem [#allocation2], %s39
    %v41 = vld [vmem:[%s40] sm:$0xff]
    %s42 = sadd.s32 0, 32
    %s43 = scalar_lea.vmem [#allocation2], %s42
    %v44 = vld [vmem:[%s43] sm:$0xff]
    %s45 = sadd.s32 0, 40
    %s46 = scalar_lea.vmem [#allocation2], %s45
    %v47 = vld [vmem:[%s46] sm:$0xff]
    %s48 = sadd.s32 0, 48
    %s49 = scalar_lea.vmem [#allocation2], %s48
    %v50 = vld [vmem:[%s49] sm:$0xff]
    %s51 = sadd.s32 0, 56
    %s52 = scalar_lea.vmem [#allocation2], %s51
    %v53 = vld [vmem:[%s52] sm:$0xff]
    %s54 = sadd.s32 0, 64
    %s55 = scalar_lea.vmem [#allocation2], %s54
    %v56 = vld [vmem:[%s55] sm:$0xff]
    %s57 = sadd.s32 0, 72
    %s58 = scalar_lea.vmem [#allocation2], %s57
    %v59 = vld [vmem:[%s58] sm:$0xff]
    %v60 = vmul.f32 %v44, %v56
    %v61 = vmul.f32 %v47, %v53
    %v62 = vsub.f32 %v60, %v61
    %v63 = vmul.f32 %v47, %v50
    %v64 = vmul.f32 %v41, %v56
    %v65 = vsub.f32 %v63, %v64
    %v66 = vmul.f32 %v41, %v53
    %v67 = vmul.f32 %v44, %v50
    %v68 = vsub.f32 %v66, %v67
    %v69 = vmul.f32 %v62, %v62
    %v70 = vmul.f32 %v65, %v65
    %v71 = vadd.f32 %v69, %v70
    %v72 = vmul.f32 %v68, %v68
    %v73 = vadd.f32 %v71, %v72
    %v74 = vmax.f32 %v73, 1e-24
    %v75 = vrsqrt.pop %v74
    %v76 = vmul.f32 %v32, %v62
    %v77 = vmul.f32 %v35, %v65
    %v78 = vadd.f32 %v76, %v77
    %v79 = vmul.f32 %v38, %v68
    %v80 = vadd.f32 %v78, %v79
    %v81 = vmul.f32 %v80, %v75
    %v82 = vsub.f32 0.3, %v81
    %v83 = vmax.f32 %v82, 0.0
    %v84 = vmul.f32 %v83, %v83
    %v85 = vmul.f32 %v84, %v83
    %v86 = vmul.f32 %v85, %v59
    %v87 = vadd.f32 %v86, 0.0
    %v88 = vld [vmem:[#allocation5] sm:$0xff]
    %v89 = vadd.f32 %v88, %v87
    %90 = vst [vmem:[#allocation5] sm:$0xff] %v89
    // Predicated region
    $region14: #{tpu_custom_call.1} parent=1 // pred_check
      _
    $region15: #{tpu_custom_call.1} parent=1 // pred_check_branch
      %92 = sbr.rel (0) target = $region17
    $region16: #{tpu_custom_call.1} parent=1 // pred_region
      %s94 = ssub.s32 128, 128
      %95 = vsyncadd [#allocation4], %s94
      %s97 = sshll.u32 [#allocation5], 4
      %s98 = int_to_ptr.vmem [resolvable:$true] %s97
      %100 = dma.vmem_to_hbm [thread:$0]  %s98, 128, %s1, [#allocation4]
    $region17: #{tpu_custom_call.1} parent=1 // pred_fallthru
      _
    // Predicated region
    $region18: #{tpu_custom_call.1} parent=1 // pred_check
      _
    $region19: #{tpu_custom_call.1} parent=1 // pred_check_branch
      %102 = sbr.rel (0) target = $region21
    $region20: #{tpu_custom_call.1} parent=1 // pred_region
      %103 = dma.done [#allocation4], 128
    $region21: #{tpu_custom_call.1} parent=1 // pred_fallthru
      _
    %104 = vsyncpa [#allocation3], 1
    %105 = vsyncpa [#allocation4], 1

</llo_original>
